<compile_context>
chip_gen: v6e
topology: v6e:2x2x1
jax: 0.10.0
libtpu: 0.0.40
codegen_flags: <defaults>
</compile_context>

<pallas_src>
import functools

import jax
import jax.numpy as jnp
import numpy as np
from jax.experimental import pallas as pl
from jax.experimental.pallas import tpu as pltpu

_MiB = 1024 * 1024


def _cdiv(a, b):
    return -(-a // b)


def _attention_gate_kernel(g_ref, x_ref, wg_ref, wx_ref, b1_ref, wp_ref,
                           bp_ref, o_ref):
    """Pixels-on-lane attention gate.

    g_ref: (Cg, tp)   pixel tile of g (lane axis = pixels), storage dtype
    x_ref: (Cx, tp)   pixel tile of x, storage dtype
    wg_ref: (F_int, Cg), wx_ref: (F_int, Cx)   folded conv+BN weights (mm dtype)
    b1_ref: (F_int, 1)  folded (b_g + b_x), f32
    wp_ref: (1, F_int)  folded psi conv+BN weight (mm dtype)
    bp_ref: (1,)        folded psi bias (SMEM scalar, f32)
    o_ref:  (Cx, tp)    storage dtype
    """
    mm_dtype = wg_ref.dtype          # bf16 on the bf16-storage path, else f32
    x = x_ref[...]
    g = g_ref[...]
    # Fused branch projections, accumulated in f32 on the MXU.
    h = jnp.dot(wg_ref[...], g.astype(mm_dtype),
                preferred_element_type=jnp.float32)
    h = h + jnp.dot(wx_ref[...], x.astype(mm_dtype),
                    preferred_element_type=jnp.float32)
    h = jnp.maximum(h + b1_ref[...], 0.0)              # ReLU, (F_int, tp) f32
    psi = jnp.dot(wp_ref[...], h.astype(mm_dtype),
                  preferred_element_type=jnp.float32)
    psi = jax.nn.sigmoid(psi + bp_ref[0])              # (1, tp), lane-dense
    o_ref[...] = (x.astype(jnp.float32) * psi).astype(o_ref.dtype)


def _fold_bn_t(w, b, gamma, beta, mean, var, eps=1e-5):
    """Fold conv bias + eval-mode BatchNorm into the 1x1 conv, transposed.

    w: (C_in, C_out), b: (C_out,).  Returns (w_eff (C_out, C_in), b_eff (C_out,)).
    """
    scale = gamma / jnp.sqrt(var + eps)
    w_eff = (w * scale[None, :]).T
    b_eff = b * scale + (beta - mean * scale)
    return w_eff, b_eff


def _vmem_config(cg, cx):
    """(tile budget, scoped-VMEM limit), tightened for v7x's 64 MiB VMEM."""
    budget, limit = 10 * _MiB, 32 * _MiB
    try:
        phys = getattr(pltpu.get_tpu_info(), "vmem_capacity_bytes", 0)
    except Exception:  # non-TPU trace / older jax: keep conservative defaults
        phys = 0
    # v5e/v6e (128 MiB physical VMEM): allow bigger tiles when channels are
    # wide so tp stays >= ~1024 lanes; keep v7x (64 MiB) at the tight setting.
    if phys >= 100 * _MiB and (cg + 2 * cx) >= 1024:
        budget, limit = 24 * _MiB, 64 * _MiB
    return budget, limit


def _pick_pixel_tile(hw, cg, cx, f_int, store_itemsize, vmem_budget_bytes):
    """Pixel (lane) tile: lane-dense, VMEM-budgeted, no divisibility demand."""
    # Per-lane VMEM per step: double-buffered g/x/out tiles (storage dtype)
    # plus the compiler-materialized f32 intermediates h (F_int, tp) and psi.
    bytes_per_lane = 2 * (cg + 2 * cx) * store_itemsize + (f_int + 1) * 4
    cap = max(128, (vmem_budget_bytes // bytes_per_lane) // 128 * 128)
    cap = min(cap, 8192)
    # hw <= cap: single full-extent lane block (allowed even if hw % 128 != 0).
    # hw  > cap: fixed multiple-of-128 tile; cdiv grid + masked tail covers HW.
    return hw if hw <= cap else cap


def _even_total_grid(hw, n_batch, tp):
    """Keep N * num_pixel_tiles even so both v7x TensorCores get equal work."""
    total = lambda t: n_batch * _cdiv(hw, t)
    if total(tp) % 2 == 0:
        return tp
    if _cdiv(hw, tp) == 1:
        # Split the single pixel block into two ~equal lane-dense halves.
        half = _cdiv(_cdiv(hw, 2), 128) * 128
        return half if 128 <= half < hw else tp
    # Shrink tp in 128-lane steps (never below half) looking for an even total.
    cand = tp - 128
    while cand >= max(128, tp // 2):
        if total(cand) % 2 == 0:
            return cand
        cand -= 128
    return tp  # odd-batch / odd-tiles corner case: accept the imbalance


def _pixel_spec(block_shape, index_map, extra_buffering):
    """BlockSpec with optional 3-deep pipelining (guarded for older jax)."""
    if extra_buffering and hasattr(pl, "Buffered"):
        try:
            return pl.BlockSpec(block_shape, index_map,
                                pipeline_mode=pl.Buffered(3))
        except TypeError:  # pipeline_mode unsupported on this jax version
            pass
    return pl.BlockSpec(block_shape, index_map)


@functools.partial(jax.jit, static_argnames=("storage_dtype",))
def attention_block(g, x, params, storage_dtype=jnp.bfloat16):
    """g, x: NCHW float32.  params: dict of conv/BN parameters.

    storage_dtype: HBM dtype of the kernel's g/x/out tensors.  bf16 halves the
    HBM traffic of this bandwidth-bound gate (~2x on v5e/v6e); pass
    jnp.float32 for a bit-faithful f32 path.  In a real U-Net the producers
    would emit bf16 directly; here the wrapper casts (one extra XLA pass).
    """
    N, Cg, H, W = g.shape
    _, Cx, _, _ = x.shape
    HW = H * W
    storage_dtype = np.dtype(storage_dtype)
    itemsize = storage_dtype.itemsize
    # bf16 MXU operands (f32 accumulate) whenever storage is bf16 — keeps v5e
    # off its slow f32 MXU path.  The pure-f32 path stays exact vs reference.
    mm_dtype = jnp.bfloat16 if storage_dtype == np.dtype(jnp.bfloat16) \
        else jnp.float32

    # NCHW already has channels-on-sublane / pixels-on-lane after a free reshape.
    g3 = g.reshape(N, Cg, HW).astype(storage_dtype)
    x3 = x.reshape(N, Cx, HW).astype(storage_dtype)

    # Fold BatchNorm (eval) into the 1x1 convs; transpose to (C_out, C_in).
    wg, bg = _fold_bn_t(params["wg"], params["bg"], params["bn_g_gamma"],
                        params["bn_g_beta"], params["bn_g_mean"],
                        params["bn_g_var"])
    wx, bx = _fold_bn_t(params["wx"], params["bx"], params["bn_x_gamma"],
                        params["bn_x_beta"], params["bn_x_mean"],
                        params["bn_x_var"])
    wp, bp = _fold_bn_t(params["wp"], params["bp"], params["bn_p_gamma"],
                        params["bn_p_beta"], params["bn_p_mean"],
                        params["bn_p_var"])

    F_int = wg.shape[0]
    b1 = (bg + bx).reshape(F_int, 1).astype(jnp.float32)  # branch biases pre-summed
    bp = bp.reshape(1).astype(jnp.float32)                # scalar, lives in SMEM
    wg = wg.astype(mm_dtype)
    wx = wx.astype(mm_dtype)
    wp = wp.astype(mm_dtype)

    vmem_budget, vmem_limit = _vmem_config(Cg, Cx)
    tp = _pick_pixel_tile(HW, Cg, Cx, F_int, itemsize, vmem_budget)
    tp = _even_total_grid(HW, N, tp)
    num_pix = _cdiv(HW, tp)
    grid = (N, num_pix)
    # Deeper input buffering only for small tiles with enough steps to pipeline
    # (hides per-DMA issue overhead on v7x); Buffered(2) is best at tp >= 1024.
    extra_buffering = (tp <= 512) and (N * num_pix >= 4)

    full = lambda n, p: (0, 0)           # resident weights / biases

    # Advisory cost: lets XLA overlap surrounding U-Net convs with this
    # mem-bound custom call.
    cost = pl.CostEstimate(
        flops=2 * N * HW * F_int * (Cg + Cx + 1) + 4 * N * HW * (F_int + Cx),
        transcendentals=N * HW,
        bytes_accessed=N * HW * (Cg + 2 * Cx) * itemsize
        + 4 * (F_int * (Cg + Cx + 2) + 1),
    )

    out3 = pl.pallas_call(
        _attention_gate_kernel,
        out_shape=jax.ShapeDtypeStruct((N, Cx, HW), storage_dtype),
        grid_spec=pltpu.PrefetchScalarGridSpec(
            num_scalar_prefetch=0,
            grid=grid,
            in_specs=[
                _pixel_spec((None, Cg, tp), lambda n, p: (n, 0, p),
                            extra_buffering),                          # g tile
                _pixel_spec((None, Cx, tp), lambda n, p: (n, 0, p),
                            extra_buffering),                          # x tile
                pl.BlockSpec((F_int, Cg), full),                       # W_g
                pl.BlockSpec((F_int, Cx), full),                       # W_x
                pl.BlockSpec((F_int, 1), full),                        # b_g + b_x
                pl.BlockSpec((1, F_int), full),                        # W_psi
                pl.BlockSpec(memory_space=pltpu.MemorySpace.SMEM),     # b_psi
            ],
            out_specs=pl.BlockSpec((None, Cx, tp), lambda n, p: (n, 0, p)),
        ),
        compiler_params=pltpu.CompilerParams(
            dimension_semantics=("parallel", "parallel"),
            vmem_limit_bytes=vmem_limit),
        cost_estimate=cost,
    )(g3, x3, wg, wx, b1, wp, bp)

    return out3.reshape(N, Cx, H, W)


def _reference(g, x, params, eps=1e-5):
    """Pure-JAX reference mirroring the PyTorch forward (eval-mode BN)."""
    def conv_bn(inp, w, b, gamma, beta, mean, var):
        # inp: NCHW, 1x1 conv via einsum over channel axis; w: (C_in, C_out).
        y = jnp.einsum("nchw,co->nohw", inp, w) + b[None, :, None, None]
        scale = gamma / jnp.sqrt(var + eps)
        return y * scale[None, :, None, None] + (
            beta - mean * scale)[None, :, None, None]

    g1 = conv_bn(g, params["wg"], params["bg"], params["bn_g_gamma"],
                 params["bn_g_beta"], params["bn_g_mean"], params["bn_g_var"])
    x1 = conv_bn(x, params["wx"], params["bx"], params["bn_x_gamma"],
                 params["bn_x_beta"], params["bn_x_mean"], params["bn_x_var"])
    psi = jnp.maximum(g1 + x1, 0.0)
    psi = conv_bn(psi, params["wp"], params["bp"], params["bn_p_gamma"],
                  params["bn_p_beta"], params["bn_p_mean"],
                  params["bn_p_var"])
    psi = jax.nn.sigmoid(psi)
    return x * psi


def make_params(key, F_g, F_l, F_int):
    ks = jax.random.split(key, 6)
    p = {
        # 1x1 conv weights stored as (C_in, C_out)
        "wg": jax.random.normal(ks[0], (F_g, F_int), jnp.float32) * 0.1,
        "bg": jax.random.normal(ks[1], (F_int,), jnp.float32) * 0.1,
        "wx": jax.random.normal(ks[2], (F_l, F_int), jnp.float32) * 0.1,
        "bx": jax.random.normal(ks[3], (F_int,), jnp.float32) * 0.1,
        "wp": jax.random.normal(ks[4], (F_int, 1), jnp.float32) * 0.1,
        "bp": jax.random.normal(ks[5], (1,), jnp.float32) * 0.1,
        # BatchNorm (eval) params — PyTorch defaults: gamma=1, beta=0,
        # running_mean=0, running_var=1.
        "bn_g_gamma": jnp.ones((F_int,), jnp.float32),
        "bn_g_beta": jnp.zeros((F_int,), jnp.float32),
        "bn_g_mean": jnp.zeros((F_int,), jnp.float32),
        "bn_g_var": jnp.ones((F_int,), jnp.float32),
        "bn_x_gamma": jnp.ones((F_int,), jnp.float32),
        "bn_x_beta": jnp.zeros((F_int,), jnp.float32),
        "bn_x_mean": jnp.zeros((F_int,), jnp.float32),
        "bn_x_var": jnp.ones((F_int,), jnp.float32),
        "bn_p_gamma": jnp.ones((1,), jnp.float32),
        "bn_p_beta": jnp.zeros((1,), jnp.float32),
        "bn_p_mean": jnp.zeros((1,), jnp.float32),
        "bn_p_var": jnp.ones((1,), jnp.float32),
    }
    return p


if __name__ == "__main__":
    F_g, F_l, F_int = 4, 4, 8
    N, H, W = 2, 16, 16

    key = jax.random.PRNGKey(0)
    kg, kx, kp = jax.random.split(key, 3)
    g = jax.random.normal(kg, (N, F_g, H, W), jnp.float32)
    x = jax.random.normal(kx, (N, F_l, H, W), jnp.float32)
    params = make_params(kp, F_g, F_l, F_int)

    ref = _reference(g, x, params)

    # Default bf16-storage path (halves HBM traffic of the mem-bound gate).
    out_bf16 = jax.block_until_ready(
        attention_block(g, x, params, storage_dtype=jnp.bfloat16))
    assert out_bf16.shape == (N, F_l, H, W)
    assert out_bf16.dtype == jnp.bfloat16
    assert jnp.allclose(out_bf16.astype(jnp.float32), ref,
                        atol=3e-2, rtol=3e-2), "bf16 path mismatch vs reference"

    # f32-storage path stays bit-faithful to the eval-mode reference.
    out_f32 = jax.block_until_ready(
        attention_block(g, x, params, storage_dtype=jnp.float32))
    assert jnp.allclose(out_f32, ref, atol=1e-5, rtol=1e-5), \
        "f32 path mismatch vs reference"

    print("KERNEL_OK")
</pallas_src>

<mosaic_0001>
module attributes {stable_mosaic.version = 11 : i64} {
  func.func @_attention_gate_kernel(%arg0: i32, %arg1: i32, %arg2: memref<1x4x256xbf16, #tpu.memory_space<vmem>>, %arg3: memref<1x4x256xbf16, #tpu.memory_space<vmem>>, %arg4: memref<8x4xbf16, #tpu.memory_space<vmem>>, %arg5: memref<8x4xbf16, #tpu.memory_space<vmem>>, %arg6: memref<8x1xf32, #tpu.memory_space<vmem>>, %arg7: memref<1x8xbf16, #tpu.memory_space<vmem>>, %arg8: memref<1xf32, #tpu.memory_space<smem>>, %arg9: memref<1x4x256xbf16, #tpu.memory_space<vmem>>) attributes {dimension_semantics = [#tpu.dimension_semantics<parallel>, #tpu.dimension_semantics<parallel>], iteration_bounds = array<i64: 2, 1>, scalar_prefetch = 0 : i64, scratch_operands = 0 : i64, tpu.core_type = #tpu.core_type<tc>, window_params = [{transform_indices = @transform_0, window_bounds = array<i64: 1, 4, 256>}, {transform_indices = @transform_1, window_bounds = array<i64: 1, 4, 256>}, {pipeline_mode = #tpu.pipeline_mode<synchronous>, transform_indices = @transform_2, window_bounds = array<i64: 8, 4>}, {pipeline_mode = #tpu.pipeline_mode<synchronous>, transform_indices = @transform_3, window_bounds = array<i64: 8, 4>}, {pipeline_mode = #tpu.pipeline_mode<synchronous>, transform_indices = @transform_4, window_bounds = array<i64: 8, 1>}, {pipeline_mode = #tpu.pipeline_mode<synchronous>, transform_indices = @transform_5, window_bounds = array<i64: 1, 8>}, {transform_indices = @transform_6, window_bounds = array<i64: 1>}, {transform_indices = @transform_7, window_bounds = array<i64: 1, 4, 256>}]} {
    %c0 = arith.constant 0 : index
    %c0_0 = arith.constant 0 : index
    %c0_1 = arith.constant 0 : index
    %0 = vector.load %arg3[%c0, %c0_0, %c0_1] : memref<1x4x256xbf16, #tpu.memory_space<vmem>>, vector<1x4x256xbf16>
    %1 = vector.shape_cast %0 : vector<1x4x256xbf16> to vector<4x256xbf16>
    %c0_2 = arith.constant 0 : index
    %c0_3 = arith.constant 0 : index
    %c0_4 = arith.constant 0 : index
    %2 = vector.load %arg2[%c0_2, %c0_3, %c0_4] : memref<1x4x256xbf16, #tpu.memory_space<vmem>>, vector<1x4x256xbf16>
    %3 = vector.shape_cast %2 : vector<1x4x256xbf16> to vector<4x256xbf16>
    %c0_5 = arith.constant 0 : index
    %c0_6 = arith.constant 0 : index
    %4 = vector.load %arg4[%c0_5, %c0_6] : memref<8x4xbf16, #tpu.memory_space<vmem>>, vector<8x4xbf16>
    %cst = arith.constant dense<0.000000e+00> : vector<8x256xf32>
    %5 = tpu.matmul %4, %3, %cst {dimension_numbers = #tpu.dot_dimension_numbers<[1], [0], [0], [1], [0, 0, 1, 1], [], []>} : vector<8x4xbf16>, vector<4x256xbf16>, vector<8x256xf32> -> vector<8x256xf32>
    %c0_7 = arith.constant 0 : index
    %c0_8 = arith.constant 0 : index
    %6 = vector.load %arg5[%c0_7, %c0_8] : memref<8x4xbf16, #tpu.memory_space<vmem>>, vector<8x4xbf16>
    %cst_9 = arith.constant dense<0.000000e+00> : vector<8x256xf32>
    %7 = tpu.matmul %6, %1, %cst_9 {dimension_numbers = #tpu.dot_dimension_numbers<[1], [0], [0], [1], [0, 0, 1, 1], [], []>} : vector<8x4xbf16>, vector<4x256xbf16>, vector<8x256xf32> -> vector<8x256xf32>
    %8 = arith.addf %5, %7 : vector<8x256xf32>
    %c0_10 = arith.constant 0 : index
    %c0_11 = arith.constant 0 : index
    %9 = vector.load %arg6[%c0_10, %c0_11] : memref<8x1xf32, #tpu.memory_space<vmem>>, vector<8x1xf32>
    %10 = vector.broadcast %9 : vector<8x1xf32> to vector<8x256xf32>
    %11 = arith.addf %8, %10 : vector<8x256xf32>
    %cst_12 = arith.constant 0.000000e+00 : f32
    %12 = vector.broadcast %cst_12 : f32 to vector<8x256xf32>
    %13 = arith.maximumf %11, %12 : vector<8x256xf32>
    %c0_13 = arith.constant 0 : index
    %c0_14 = arith.constant 0 : index
    %14 = vector.load %arg7[%c0_13, %c0_14] : memref<1x8xbf16, #tpu.memory_space<vmem>>, vector<1x8xbf16>
    %15 = arith.truncf %13 : vector<8x256xf32> to vector<8x256xbf16>
    %cst_15 = arith.constant dense<0.000000e+00> : vector<1x256xf32>
    %16 = tpu.matmul %14, %15, %cst_15 {dimension_numbers = #tpu.dot_dimension_numbers<[1], [0], [0], [1], [0, 0, 1, 1], [], []>} : vector<1x8xbf16>, vector<8x256xbf16>, vector<1x256xf32> -> vector<1x256xf32>
    %c0_16 = arith.constant 0 : index
    %17 = memref.load %arg8[%c0_16] : memref<1xf32, #tpu.memory_space<smem>>
    %18 = vector.broadcast %17 : f32 to vector<1x256xf32>
    %19 = arith.addf %16, %18 : vector<1x256xf32>
    %20 = arith.negf %19 : vector<1x256xf32>
    %21 = math.exp %20 : vector<1x256xf32>
    %cst_17 = arith.constant 1.000000e+00 : f32
    %22 = vector.broadcast %cst_17 : f32 to vector<1x256xf32>
    %23 = arith.addf %22, %21 : vector<1x256xf32>
    %24 = arith.divf %22, %23 : vector<1x256xf32>
    %25 = arith.extf %1 : vector<4x256xbf16> to vector<4x256xf32>
    %26 = vector.broadcast %24 : vector<1x256xf32> to vector<4x256xf32>
    %27 = arith.mulf %25, %26 : vector<4x256xf32>
    %28 = arith.truncf %27 : vector<4x256xf32> to vector<4x256xbf16>
    %c0_18 = arith.constant 0 : index
    %c0_19 = arith.constant 0 : index
    %c0_20 = arith.constant 0 : index
    %29 = vector.load %arg9[%c0_18, %c0_19, %c0_20] : memref<1x4x256xbf16, #tpu.memory_space<vmem>>, vector<1x4x256xbf16>
    %30 = vector.shape_cast %29 : vector<1x4x256xbf16> to vector<4x256xbf16>
    %31 = vector.shape_cast %28 : vector<4x256xbf16> to vector<1x4x256xbf16>
    tpu.vector_store %arg9[%c0_18, %c0_19, %c0_20], %31 {strides = array<i32>} : memref<1x4x256xbf16, #tpu.memory_space<vmem>>, vector<1x4x256xbf16>,
    return
  }
  func.func @transform_0(%arg0: i32, %arg1: i32) -> (i32, i32, i32) {
    %c0_i32 = arith.constant 0 : i32
    %c0_i32_0 = arith.constant 0 : i32
    return %arg0, %c0_i32, %arg1 : i32, i32, i32
  }
  func.func @transform_1(%arg0: i32, %arg1: i32) -> (i32, i32, i32) {
    %c0_i32 = arith.constant 0 : i32
    %c0_i32_0 = arith.constant 0 : i32
    return %arg0, %c0_i32, %arg1 : i32, i32, i32
  }
  func.func @transform_2(%arg0: i32, %arg1: i32) -> (i32, i32) {
    %c0_i32 = arith.constant 0 : i32
    %c0_i32_0 = arith.constant 0 : i32
    %c0_i32_1 = arith.constant 0 : i32
    return %c0_i32, %c0_i32_0 : i32, i32
  }
  func.func @transform_3(%arg0: i32, %arg1: i32) -> (i32, i32) {
    %c0_i32 = arith.constant 0 : i32
    %c0_i32_0 = arith.constant 0 : i32
    %c0_i32_1 = arith.constant 0 : i32
    return %c0_i32, %c0_i32_0 : i32, i32
  }
  func.func @transform_4(%arg0: i32, %arg1: i32) -> (i32, i32) {
    %c0_i32 = arith.constant 0 : i32
    %c0_i32_0 = arith.constant 0 : i32
    %c0_i32_1 = arith.constant 0 : i32
    return %c0_i32, %c0_i32_0 : i32, i32
  }
  func.func @transform_5(%arg0: i32, %arg1: i32) -> (i32, i32) {
    %c0_i32 = arith.constant 0 : i32
    %c0_i32_0 = arith.constant 0 : i32
    %c0_i32_1 = arith.constant 0 : i32
    return %c0_i32, %c0_i32_0 : i32, i32
  }
  func.func @transform_6(%arg0: i32, %arg1: i32) -> i32 {
    %c0_i32 = arith.constant 0 : i32
    %c0_i32_0 = arith.constant 0 : i32
    return %c0_i32 : i32
  }
  func.func @transform_7(%arg0: i32, %arg1: i32) -> (i32, i32, i32) {
    %c0_i32 = arith.constant 0 : i32
    %c0_i32_0 = arith.constant 0 : i32
    return %arg0, %c0_i32, %arg1 : i32, i32, i32
  }
}

</mosaic_0001>

<llo_original>
// kernel: attention_block.1
$region0: #{attention_block.1}
  #allocation0 [shape = 'u32[]', space=smem, size = 0x4, offset = 0x4, fixed_abs, tag = 'smem constant byte address 0x4 - core index']
  #allocation1 [shape = 'u32[144,128]{1,0:T(1,128)}', space=vmem, size = 0x12000, scoped, tag = 'internal scratch']
  #allocation2 [shape = 'f32[1]{0:T(128)S(6)}', space=smem, size = 0x200, scoped, tag = 'scoped memory for attention_block.1']
  %s0 = inlined_call_operand.vmem [shape: bf16[2,4,256], index: 0, kind: input, shape index: {}]
  %s1 = inlined_call_operand.vmem [shape: bf16[2,4,256], index: 1, kind: input, shape index: {}]
  %s2 = inlined_call_operand.vmem [shape: bf16[8,4], index: 2, kind: input, shape index: {}]
  %s3 = inlined_call_operand.vmem [shape: bf16[8,4], index: 3, kind: input, shape index: {}]
  %s4 = inlined_call_operand.vmem [shape: f32[8,1], index: 4, kind: input, shape index: {}]
  %s5 = inlined_call_operand.vmem [shape: bf16[1,8], index: 5, kind: input, shape index: {}]
  %s6 = inlined_call_operand.<no memory space> [shape: f32[1], index: 6, kind: input, shape index: {}]
  %s7 = inlined_call_operand.vmem [shape: bf16[2,4,256], index: 7, kind: output, shape index: {}]
  %s8 = sld [smem:[#allocation0]]
  $region61: #{attention_block.1} parent=0
    _
  %s10 = ssub.s32 1, %s8
  %s11 = scalar_select 0, %s10, %s8
  %12 = sst [smem:[#allocation2]] %s6
  loop: start=0, step=1, limit=4
  $region2: #{attention_block.1} parent=0 // loop_pre_header
    _
  $region3: #{attention_block.1} parent=0 // loop_header
    %s14 = sphi 0, %s18
    %p15 = scmp.ge.s32.totalorder %s14, 4
    %s21 = sphi 0, %s33
    %s22 = sphi 0, %s29
    %s23 = sphi 0, %s21
    %s24 = sphi 0, %s22
    %s25 = sphi 0, %s23
    %s26 = sphi 0, %s24
    %s38 = sphi 0, %s40
    %s41 = sphi 0, %s38
    %s42 = sphi 0, %s41
    %s58 = sphi 0, %s42
    %s66 = sphi 0, %s68
    %s69 = sphi 0, %s66
    %s70 = sphi 0, %s69
    %s86 = sphi 0, %s70
    %s90 = sphi 0, %s90
    %s92 = sphi 0, %s90
    %s93 = sphi 0, %s92
    %s107 = sphi 0, %s93
    %s111 = sphi 0, %s111
    %s113 = sphi 0, %s111
    %s114 = sphi 0, %s113
    %s128 = sphi 0, %s114
    %s132 = sphi 0, %s132
    %s134 = sphi 0, %s132
    %s135 = sphi 0, %s134
    %s149 = sphi 0, %s135
    %s153 = sphi 0, %s153
    %s155 = sphi 0, %s153
    %s156 = sphi 0, %s155
    %s170 = sphi 0, %s156
    %s174 = sphi 0, %s174
    %s176 = sphi 0, %s174
    %s177 = sphi 0, %s176
    %s191 = sphi 0, %s177
    %s199 = sphi 0, %s201
    %s202 = sphi 0, %s199
    %s203 = sphi 0, %s202
    %s219 = sphi 0, %s203
  $region4: #{attention_block.1} parent=0 // loop_header_branch
    %17 = sbr.rel (%p15) target = $region8
  $region5: #{attention_block.1} parent=0 // loop_body
    %s19 = ssub.s32 %s14, 1
    %s20 = ssub.s32 %s14, 2
    %s27 = sadd.s32 1, %s22
    %p28 = scmp.ge.s32.totalorder %s27, 1
    %s29 = scalar_select %p28, 0, %s27
    %s30 = sadd.s32 1, %s21
    %s31 = scalar_select %p28, %s30, %s21
    %p32 = scmp.ge.s32.totalorder %s31, 2
    %s33 = scalar_select %p32, 0, %s31
    %s34 = ssub.s32 %s21, %s33
    %s35 = ssub.s32 %s22, %s29
    %s36 = sor.u32 %s34, %s35
    %p37 = scmp.eq.s32.totalorder %s36, 0
    %s39 = sadd.s32 %s38, 1
    %s40 = scalar_select %p37, %s38, %s39
    %p43 = pneg %p37
    %p44 = scmp.eq.s32.totalorder %s14, 1
    %p45 = por %p43, %p44
    %p46 = scmp.ne.s32.totalorder %s38, %s41
    %p47 = scmp.eq.s32.totalorder %s14, 0
    %p48 = por %p46, %p47
    %p49 = scmp.ne.s32.totalorder %s38, %s41
    %p50 = scmp.eq.s32.totalorder %s19, 1
    %p51 = por %p49, %p50
    %p52 = scmp.ne.s32.totalorder %s41, %s42
    %p53 = scmp.eq.s32.totalorder %s19, 0
    %p54 = por %p52, %p53
    %p55 = scmp.ne.s32.totalorder %s41, %s42
    %p56 = scmp.eq.s32.totalorder %s20, 1
    %p57 = por %p55, %p56
    %p59 = scmp.ne.s32.totalorder %s42, %s58
    %p60 = scmp.eq.s32.totalorder %s20, 0
    %p61 = por %p59, %p60
    %s62 = ssub.s32 %s21, %s33
    %s63 = ssub.s32 %s22, %s29
    %s64 = sor.u32 %s62, %s63
    %p65 = scmp.eq.s32.totalorder %s64, 0
    %s67 = sadd.s32 %s66, 1
    %s68 = scalar_select %p65, %s66, %s67
    %p71 = pneg %p65
    %p72 = scmp.eq.s32.totalorder %s14, 1
    %p73 = por %p71, %p72
    %p74 = scmp.ne.s32.totalorder %s66, %s69
    %p75 = scmp.eq.s32.totalorder %s14, 0
    %p76 = por %p74, %p75
    %p77 = scmp.ne.s32.totalorder %s66, %s69
    %p78 = scmp.eq.s32.totalorder %s19, 1
    %p79 = por %p77, %p78
    %p80 = scmp.ne.s32.totalorder %s69, %s70
    %p81 = scmp.eq.s32.totalorder %s19, 0
    %p82 = por %p80, %p81
    %p83 = scmp.ne.s32.totalorder %s69, %s70
    %p84 = scmp.eq.s32.totalorder %s20, 1
    %p85 = por %p83, %p84
    %p87 = scmp.ne.s32.totalorder %s70, %s86
    %p88 = scmp.eq.s32.totalorder %s20, 0
    %p89 = por %p87, %p88
    %s91 = sadd.s32 %s90, 1
    %p94 = scmp.eq.s32.totalorder %s14, 1
    %p95 = scmp.ne.s32.totalorder %s90, %s92
    %p96 = scmp.eq.s32.totalorder %s14, 0
    %p97 = por %p95, %p96
    %p98 = scmp.ne.s32.totalorder %s90, %s92
    %p99 = scmp.eq.s32.totalorder %s19, 1
    %p100 = por %p98, %p99
    %p101 = scmp.ne.s32.totalorder %s92, %s93
    %p102 = scmp.eq.s32.totalorder %s19, 0
    %p103 = por %p101, %p102
    %p104 = scmp.ne.s32.totalorder %s92, %s93
    %p105 = scmp.eq.s32.totalorder %s20, 1
    %p106 = por %p104, %p105
    %p108 = scmp.ne.s32.totalorder %s93, %s107
    %p109 = scmp.eq.s32.totalorder %s20, 0
    %p110 = por %p108, %p109
    %s112 = sadd.s32 %s111, 1
    %p115 = scmp.eq.s32.totalorder %s14, 1
    %p116 = scmp.ne.s32.totalorder %s111, %s113
    %p117 = scmp.eq.s32.totalorder %s14, 0
    %p118 = por %p116, %p117
    %p119 = scmp.ne.s32.totalorder %s111, %s113
    %p120 = scmp.eq.s32.totalorder %s19, 1
    %p121 = por %p119, %p120
    %p122 = scmp.ne.s32.totalorder %s113, %s114
    %p123 = scmp.eq.s32.totalorder %s19, 0
    %p124 = por %p122, %p123
    %p125 = scmp.ne.s32.totalorder %s113, %s114
    %p126 = scmp.eq.s32.totalorder %s20, 1
    %p127 = por %p125, %p126
    %p129 = scmp.ne.s32.totalorder %s114, %s128
    %p130 = scmp.eq.s32.totalorder %s20, 0
    %p131 = por %p129, %p130
    %s133 = sadd.s32 %s132, 1
    %p136 = scmp.eq.s32.totalorder %s14, 1
    %p137 = scmp.ne.s32.totalorder %s132, %s134
    %p138 = scmp.eq.s32.totalorder %s14, 0
    %p139 = por %p137, %p138
    %p140 = scmp.ne.s32.totalorder %s132, %s134
    %p141 = scmp.eq.s32.totalorder %s19, 1
    %p142 = por %p140, %p141
    %p143 = scmp.ne.s32.totalorder %s134, %s135
    %p144 = scmp.eq.s32.totalorder %s19, 0
    %p145 = por %p143, %p144
    %p146 = scmp.ne.s32.totalorder %s134, %s135
    %p147 = scmp.eq.s32.totalorder %s20, 1
    %p148 = por %p146, %p147
    %p150 = scmp.ne.s32.totalorder %s135, %s149
    %p151 = scmp.eq.s32.totalorder %s20, 0
    %p152 = por %p150, %p151
    %s154 = sadd.s32 %s153, 1
    %p157 = scmp.eq.s32.totalorder %s14, 1
    %p158 = scmp.ne.s32.totalorder %s153, %s155
    %p159 = scmp.eq.s32.totalorder %s14, 0
    %p160 = por %p158, %p159
    %p161 = scmp.ne.s32.totalorder %s153, %s155
    %p162 = scmp.eq.s32.totalorder %s19, 1
    %p163 = por %p161, %p162
    %p164 = scmp.ne.s32.totalorder %s155, %s156
    %p165 = scmp.eq.s32.totalorder %s19, 0
    %p166 = por %p164, %p165
    %p167 = scmp.ne.s32.totalorder %s155, %s156
    %p168 = scmp.eq.s32.totalorder %s20, 1
    %p169 = por %p167, %p168
    %p171 = scmp.ne.s32.totalorder %s156, %s170
    %p172 = scmp.eq.s32.totalorder %s20, 0
    %p173 = por %p171, %p172
    %s175 = sadd.s32 %s174, 1
    %p178 = scmp.eq.s32.totalorder %s14, 1
    %p179 = scmp.ne.s32.totalorder %s174, %s176
    %p180 = scmp.eq.s32.totalorder %s14, 0
    %p181 = por %p179, %p180
    %p182 = scmp.ne.s32.totalorder %s174, %s176
    %p183 = scmp.eq.s32.totalorder %s19, 1
    %p184 = por %p182, %p183
    %p185 = scmp.ne.s32.totalorder %s176, %s177
    %p186 = scmp.eq.s32.totalorder %s19, 0
    %p187 = por %p185, %p186
    %p188 = scmp.ne.s32.totalorder %s176, %s177
    %p189 = scmp.eq.s32.totalorder %s20, 1
    %p190 = por %p188, %p189
    %p192 = scmp.ne.s32.totalorder %s177, %s191
    %p193 = scmp.eq.s32.totalorder %s20, 0
    %p194 = por %p192, %p193
    %s195 = ssub.s32 %s21, %s33
    %s196 = ssub.s32 %s22, %s29
    %s197 = sor.u32 %s195, %s196
    %p198 = scmp.eq.s32.totalorder %s197, 0
    %s200 = sadd.s32 %s199, 1
    %s201 = scalar_select %p198, %s199, %s200
    %p204 = pneg %p198
    %p205 = scmp.eq.s32.totalorder %s14, 1
    %p206 = por %p204, %p205
    %p207 = scmp.ne.s32.totalorder %s199, %s202
    %p208 = scmp.eq.s32.totalorder %s14, 0
    %p209 = por %p207, %p208
    %p210 = scmp.ne.s32.totalorder %s199, %s202
    %p211 = scmp.eq.s32.totalorder %s19, 1
    %p212 = por %p210, %p211
    %p213 = scmp.ne.s32.totalorder %s202, %s203
    %p214 = scmp.eq.s32.totalorder %s19, 0
    %p215 = por %p213, %p214
    %p216 = scmp.ne.s32.totalorder %s202, %s203
    %p217 = scmp.eq.s32.totalorder %s20, 1
    %p218 = por %p216, %p217
    %p220 = scmp.ne.s32.totalorder %s203, %s219
    %p221 = scmp.eq.s32.totalorder %s20, 0
    %p222 = por %p220, %p221
    %p223 = scmp.le.s32.totalorder 1, %s14
    %p224 = scmp.lt.s32.totalorder %s14, 3
    %p225 = pnand %p223, %p224
    %p226 = pneg %p225
    // Predicated region
    $region9: #{attention_block.1} parent=5 // pred_check
      _
    $region10: #{attention_block.1} parent=5 // pred_check_branch
      %228 = sbr.rel (%p225) target = $region12
    $region11: #{attention_block.1} parent=5 // pred_region
      %s229 = ssub.s32 %s14, 1
      // Predicated region
      $region13: #{attention_block.1} parent=11 // pred_check
        %p230 = pneg %p103
      $region14: #{attention_block.1} parent=11 // pred_check_branch
        %232 = sbr.rel (%p230) target = $region16
      $region15: #{attention_block.1} parent=11 // pred_region
        _
      $region16: #{attention_block.1} parent=11 // pred_fallthru
        _
      // Predicated region
      $region17: #{attention_block.1} parent=11 // pred_check
        %p233 = pneg %p124
      $region18: #{attention_block.1} parent=11 // pred_check_branch
        %235 = sbr.rel (%p233) target = $region20
      $region19: #{attention_block.1} parent=11 // pred_region
        _
      $region20: #{attention_block.1} parent=11 // pred_fallthru
        _
      // Predicated region
      $region21: #{attention_block.1} parent=11 // pred_check
        %p236 = pneg %p145
      $region22: #{attention_block.1} parent=11 // pred_check_branch
        %238 = sbr.rel (%p236) target = $region24
      $region23: #{attention_block.1} parent=11 // pred_region
        _
      $region24: #{attention_block.1} parent=11 // pred_fallthru
        _
      // Predicated region
      $region25: #{attention_block.1} parent=11 // pred_check
        %p239 = pneg %p166
      $region26: #{attention_block.1} parent=11 // pred_check_branch
        %241 = sbr.rel (%p239) target = $region28
      $region27: #{attention_block.1} parent=11 // pred_region
        _
      $region28: #{attention_block.1} parent=11 // pred_fallthru
        _
      // Predicated region
      $region29: #{attention_block.1} parent=11 // pred_check
        %p242 = pneg %p187
      $region30: #{attention_block.1} parent=11 // pred_check_branch
        %244 = sbr.rel (%p242) target = $region32
      $region31: #{attention_block.1} parent=11 // pred_region
        _
      $region32: #{attention_block.1} parent=11 // pred_fallthru
        _
    $region12: #{attention_block.1} parent=5 // pred_fallthru
      _
    %p245 = scmp.lt.s32.totalorder %s14, 2
    // Predicated region
    $region33: #{attention_block.1} parent=5 // pred_check
      %p246 = pneg %p245
    $region34: #{attention_block.1} parent=5 // pred_check_branch
      %248 = sbr.rel (%p246) target = $region36
    $region35: #{attention_block.1} parent=5 // pred_region
      // Predicated region
      $region37: #{attention_block.1} parent=35 // pred_check
        %p249 = pneg %p48
      $region38: #{attention_block.1} parent=35 // pred_check_branch
        %251 = sbr.rel (%p249) target = $region40
      $region39: #{attention_block.1} parent=35 // pred_region
        %s252 = smul.u32 2, %s22
        %p253 = scmp.lt.s32.totalorder %s21, 1
        %s254 = scalar_select %p253, %s21, 1
        %p255 = scmp.lt.s32.totalorder %s252, 1
        %s256 = scalar_select %p255, %s252, 1
        %s257 = smul.addr %s254, 2
        %s258 = sadd.s32 %s256, %s257
        %s259 = smul.addr %s258, 2
        %s260 = scalar_lea.vmem %s0, %s259
        %s261 = smul.u32 2, %s22
      $region40: #{attention_block.1} parent=35 // pred_fallthru
        _
      // Predicated region
      $region41: #{attention_block.1} parent=35 // pred_check
        %p262 = pneg %p76
      $region42: #{attention_block.1} parent=35 // pred_check_branch
        %264 = sbr.rel (%p262) target = $region44
      $region43: #{attention_block.1} parent=35 // pred_region
        %s265 = smul.u32 2, %s22
        %p266 = scmp.lt.s32.totalorder %s21, 1
        %s267 = scalar_select %p266, %s21, 1
        %p268 = scmp.lt.s32.totalorder %s265, 1
        %s269 = scalar_select %p268, %s265, 1
        %s270 = smul.addr %s267, 2
        %s271 = sadd.s32 %s269, %s270
        %s272 = smul.addr %s271, 2
        %s273 = scalar_lea.vmem %s1, %s272
        %s274 = smul.u32 2, %s22
      $region44: #{attention_block.1} parent=35 // pred_fallthru
        _
    $region36: #{attention_block.1} parent=5 // pred_fallthru
      _
    %p275 = scmp.le.s32.totalorder 1, %s14
    %p276 = scmp.lt.s32.totalorder %s14, 3
    %p277 = pnand %p275, %p276
    %p278 = pneg %p277
    // Predicated region
    $region45: #{attention_block.1} parent=5 // pred_check
      _
    $region46: #{attention_block.1} parent=5 // pred_check_branch
      %280 = sbr.rel (%p277) target = $region48
    $region47: #{attention_block.1} parent=5 // pred_region
      %s281 = ssub.s32 %s14, 1
      %s282 = smul.u32 2, %s24
      %p283 = scmp.lt.s32.totalorder %s23, 1
      %s284 = scalar_select %p283, %s23, 1
      %p285 = scmp.lt.s32.totalorder %s282, 1
      %s286 = scalar_select %p285, %s282, 1
      %s287 = smul.addr %s284, 2
      %s288 = sadd.s32 %s286, %s287
      %s289 = smul.addr %s288, 2
      %s290 = scalar_lea.vmem %s0, %s289
      %p291 = pneg %p54
      %p292 = pneg %p51
      %s293 = smul.u32 2, %s24
      %p294 = scmp.lt.s32.totalorder %s23, 1
      %s295 = scalar_select %p294, %s23, 1
      %p296 = scmp.lt.s32.totalorder %s293, 1
      %s297 = scalar_select %p296, %s293, 1
      %s298 = smul.addr %s295, 2
      %s299 = sadd.s32 %s297, %s298
      %s300 = smul.addr %s299, 2
      %s301 = scalar_lea.vmem %s1, %s300
      %p302 = pneg %p82
      %p303 = pneg %p79
      %p304 = pneg %p103
      %p305 = pneg %p100
      %p306 = pneg %p124
      %p307 = pneg %p121
      %p308 = pneg %p145
      %p309 = pneg %p142
      %p310 = pneg %p166
      %p311 = pneg %p163
      %p312 = pneg %p187
      %p313 = pneg %p184
      %p314 = pneg %p215
      %p315 = pneg %p212
      %s316 = smul.u32 2, %s24
      %p317 = scmp.lt.s32.totalorder %s23, 1
      %s318 = scalar_select %p317, %s23, 1
      %p319 = scmp.lt.s32.totalorder %s316, 1
      %s320 = scalar_select %p319, %s316, 1
      %s321 = smul.addr %s318, 2
      %s322 = sadd.s32 %s320, %s321
      %s323 = smul.addr %s322, 2
      %s324 = scalar_lea.vmem %s7, %s323
      %s325 = smul.u32 2, %s24
      %p326 = scmp.lt.s32.totalorder %s23, 1
      %s327 = scalar_select %p326, %s23, 1
      %p328 = scmp.lt.s32.totalorder %s325, 1
      %s329 = scalar_select %p328, %s325, 1
      %s330 = smul.addr %s327, 2
      %s331 = sadd.s32 %s329, %s330
      %s332 = smul.addr %s331, 2
      %s333 = scalar_lea.vmem %s0, %s332
      %s334 = smul.u32 2, %s24
      %s335 = smul.u32 2, %s24
      %p336 = scmp.lt.s32.totalorder %s23, 1
      %s337 = scalar_select %p336, %s23, 1
      %p338 = scmp.lt.s32.totalorder %s335, 1
      %s339 = scalar_select %p338, %s335, 1
      %s340 = smul.addr %s337, 2
      %s341 = sadd.s32 %s339, %s340
      %s342 = smul.addr %s341, 2
      %s343 = scalar_lea.vmem %s1, %s342
      %s344 = smul.u32 2, %s24
      %s345 = smul.u32 2, %s24
      %p346 = scmp.lt.s32.totalorder %s23, 1
      %s347 = scalar_select %p346, %s23, 1
      %p348 = scmp.lt.s32.totalorder %s345, 1
      %s349 = scalar_select %p348, %s345, 1
      %s350 = smul.addr %s347, 2
      %s351 = sadd.s32 %s349, %s350
      %s352 = smul.addr %s351, 2
      %s353 = scalar_lea.vmem %s7, %s352
      %s354 = smul.u32 2, %s24
      %v356 = vld [vmem:[%s343] sm:$0xf]
      %v357 = vld [vmem:[%s333] sm:$0xf]
      %v358 = vld [vmem:[%s2] sm:$0xf]
      %v359 = vld [vmem:[%s3] sm:$0xf]
      %v362 = vunpack.c.l.s4 1983009808
      %v363 = vunpack.c.0.s8 %v362
      %v364 = vlaneseq
      %v365 = vshrl.u32 %v364, 7
      %v366 = vsub.s32 %v363, %v365
      %v367 = vrot.slane %v356, %v366
      %v368 = vcombine.high %v367, %v367
      %vm369 = vcmask 31744
      %v371 = vsel %vm369, %v359, 0
      %vm373 = vcmask 1041408
      %v375 = vsel %vm373, %v367, 0
      %v378 = vsel %vm373, %v368, 0
      %380 = vmatprep.subr.bf16.mxu0 0
      %381 = vmatpush1.bf16.msra.mxu0 0
      %382 = vmatprep.subr.bf16.mxu0 0
      %383 = vmatpush1.bf16.msra.mxu0 0
      %384 = vmatprep.subr.bf16.mxu0 0
      %385 = vmatpush1.bf16.msra.mxu0 0
      %386 = vmatprep.subr.bf16.mxu0 0
      %387 = vmatpush1.bf16.msra.mxu0 0
      %388 = vmatprep.subr.bf16.mxu0 0
      %389 = vmatpush1.bf16.msra.mxu0 0
      %390 = vmatprep.subr.bf16.mxu0 0
      %391 = vmatpush1.bf16.msra.mxu0 0
      %392 = vmatprep.subr.bf16.mxu0 0
      %393 = vmatpush1.bf16.msra.mxu0 0
      %394 = vmatprep.subr.bf16.mxu0 %v378
      %395 = vmatpush1.bf16.msra.mxu0 %v375
      %396 = vmatprep.subr.bf16.mxu0 0
      %397 = vmatpush2.bf16.msra.mxu0 0
      %398 = vmatprep.subr.bf16.mxu0 0
      %399 = vmatpush2.bf16.msra.mxu0 0
      %400 = vmatprep.subr.bf16.mxu0 0
      %401 = vmatpush2.bf16.msra.mxu0 0
      %402 = vmatprep.subr.bf16.mxu0 0
      %403 = vmatpush2.bf16.msra.mxu0 0
      %404 = vmatprep.subr.bf16.mxu0 0
      %405 = vmatpush2.bf16.msra.mxu0 0
      %406 = vmatprep.subr.bf16.mxu0 0
      %407 = vmatpush2.bf16.msra.mxu0 0
      %408 = vmatprep.subr.bf16.mxu0 0
      %409 = vmatpush2.bf16.msra.mxu0 0
      %410 = vmatprep.subr.bf16.mxu0 0
      %411 = vmatpush2.bf16.msra.mxu0 0
      %412 = vmatprep.mubr.bf16.mxu0 0
      %413 = vmatmul.mubr.bf16.gmra.mxu0 %v371
      %v414 = vpop.f32.mrf.mxu0
      %v415 = vadd.f32 0.0, %v414
      %v416 = vpop.f32.mrf.mxu0
      %v417 = vadd.f32 0.0, %v416
      %v418 = vpop.f32.mrf.mxu0
      %v419 = vpop.f32.mrf.mxu0
      %420 = vdwg.mxu0
      %v423 = vunpack.c.l.s4 1983009808
      %v424 = vunpack.c.0.s8 %v423
      %v425 = vlaneseq
      %v426 = vshrl.u32 %v425, 7
      %v427 = vsub.s32 %v424, %v426
      %v428 = vrot.slane %v357, %v427
      %v429 = vcombine.high %v428, %v428
      %v431 = vsel %vm369, %v358, 0
      %v434 = vsel %vm373, %v428, 0
      %v437 = vsel %vm373, %v429, 0
      %439 = vmatprep.subr.bf16.mxu0 0
      %440 = vmatpush1.bf16.msra.mxu0 0
      %441 = vmatprep.subr.bf16.mxu0 0
      %442 = vmatpush1.bf16.msra.mxu0 0
      %443 = vmatprep.subr.bf16.mxu0 0
      %444 = vmatpush1.bf16.msra.mxu0 0
      %445 = vmatprep.subr.bf16.mxu0 0
      %446 = vmatpush1.bf16.msra.mxu0 0
      %447 = vmatprep.subr.bf16.mxu0 0
      %448 = vmatpush1.bf16.msra.mxu0 0
      %449 = vmatprep.subr.bf16.mxu0 0
      %450 = vmatpush1.bf16.msra.mxu0 0
      %451 = vmatprep.subr.bf16.mxu0 0
      %452 = vmatpush1.bf16.msra.mxu0 0
      %453 = vmatprep.subr.bf16.mxu0 %v437
      %454 = vmatpush1.bf16.msra.mxu0 %v434
      %455 = vmatprep.subr.bf16.mxu0 0
      %456 = vmatpush2.bf16.msra.mxu0 0
      %457 = vmatprep.subr.bf16.mxu0 0
      %458 = vmatpush2.bf16.msra.mxu0 0
      %459 = vmatprep.subr.bf16.mxu0 0
      %460 = vmatpush2.bf16.msra.mxu0 0
      %461 = vmatprep.subr.bf16.mxu0 0
      %462 = vmatpush2.bf16.msra.mxu0 0
      %463 = vmatprep.subr.bf16.mxu0 0
      %464 = vmatpush2.bf16.msra.mxu0 0
      %465 = vmatprep.subr.bf16.mxu0 0
      %466 = vmatpush2.bf16.msra.mxu0 0
      %467 = vmatprep.subr.bf16.mxu0 0
      %468 = vmatpush2.bf16.msra.mxu0 0
      %469 = vmatprep.subr.bf16.mxu0 0
      %470 = vmatpush2.bf16.msra.mxu0 0
      %471 = vmatprep.mubr.bf16.mxu0 0
      %472 = vmatmul.mubr.bf16.gmra.mxu0 %v431
      %v473 = vpop.f32.mrf.mxu0
      %v474 = vadd.f32 %v415, %v473
      %v475 = vpop.f32.mrf.mxu0
      %v476 = vadd.f32 %v417, %v475
      %v477 = vpop.f32.mrf.mxu0
      %v478 = vpop.f32.mrf.mxu0
      %479 = vdwg.mxu0
      %v480 = vld [vmem:[%s4] sm:$0xff]
      %482 = vset.pattern.permute.xlu0 0
      %483 = vperm.xlu0 %482, %v480
      %v484 = vpop.permute.xlu0 %483
      %v486 = vadd.f32 %v474, %v484
      %v487 = vadd.f32 %v476, %v484
      %v488 = vmax.f32 %v486, 0.0
      %v489 = vmax.f32 %v487, 0.0
      %v490 = vld [vmem:[%s5] sm:$0x1]
      %v491 = vpack.c.bf16 %v488, %v488
      %v492 = vpack.c.bf16 %v489, %v489
      %s493 = sld [smem:[#allocation2]]
      %v494 = vstv %s493
      %vm495 = vcmask 64512
      %v497 = vsel %vm495, %v490, 0
      %vm499 = vcmask 1043456
      %v501 = vsel %vm499, %v491, 0
      %v504 = vsel %vm499, %v492, 0
      %506 = vmatprep.subr.bf16.mxu0 0
      %507 = vmatpush1.bf16.msra.mxu0 0
      %508 = vmatprep.subr.bf16.mxu0 0
      %509 = vmatpush1.bf16.msra.mxu0 0
      %510 = vmatprep.subr.bf16.mxu0 0
      %511 = vmatpush1.bf16.msra.mxu0 0
      %512 = vmatprep.subr.bf16.mxu0 0
      %513 = vmatpush1.bf16.msra.mxu0 0
      %514 = vmatprep.subr.bf16.mxu0 0
      %515 = vmatpush1.bf16.msra.mxu0 0
      %516 = vmatprep.subr.bf16.mxu0 0
      %517 = vmatpush1.bf16.msra.mxu0 0
      %518 = vmatprep.subr.bf16.mxu0 0
      %519 = vmatpush1.bf16.msra.mxu0 0
      %520 = vmatprep.subr.bf16.mxu0 %v504
      %521 = vmatpush1.bf16.msra.mxu0 %v501
      %522 = vmatprep.subr.bf16.mxu0 0
      %523 = vmatpush2.bf16.msra.mxu0 0
      %524 = vmatprep.subr.bf16.mxu0 0
      %525 = vmatpush2.bf16.msra.mxu0 0
      %526 = vmatprep.subr.bf16.mxu0 0
      %527 = vmatpush2.bf16.msra.mxu0 0
      %528 = vmatprep.subr.bf16.mxu0 0
      %529 = vmatpush2.bf16.msra.mxu0 0
      %530 = vmatprep.subr.bf16.mxu0 0
      %531 = vmatpush2.bf16.msra.mxu0 0
      %532 = vmatprep.subr.bf16.mxu0 0
      %533 = vmatpush2.bf16.msra.mxu0 0
      %534 = vmatprep.subr.bf16.mxu0 0
      %535 = vmatpush2.bf16.msra.mxu0 0
      %536 = vmatprep.subr.bf16.mxu0 0
      %537 = vmatpush2.bf16.msra.mxu0 0
      %538 = vmatprep.mubr.bf16.mxu0 0
      %539 = vmatmul.mubr.bf16.gmra.mxu0 %v497
      %v540 = vpop.f32.mrf.mxu0
      %v541 = vadd.f32 %v494, %v540
      %v542 = vpop.f32.mrf.mxu0
      %v543 = vadd.f32 %v494, %v542
      %v544 = vpop.f32.mrf.mxu0
      %v545 = vpop.f32.mrf.mxu0
      %546 = vdwg.mxu0
      %v547 = vxor.u32 %v541, 2147483648
      %v548 = vxor.u32 %v543, 2147483648
      %v549 = vmul.f32 %v547, 1.442695
      %v550 = vpow.pop %v549
      %v551 = vmul.f32 %v548, 1.442695
      %v552 = vpow.pop %v551
      %v553 = vadd.f32 %v550, 1.0
      %v554 = vadd.f32 %v552, 1.0
      %v555 = vrcp.pop %v553
      %v556 = vmul.f32 1.0, %v555
      %v557 = vrcp.pop %v554
      %v558 = vmul.f32 1.0, %v557
      %v559 = vunpack.c.l.bf16 %v356
      %v560 = vlaneseq
      %v561 = vshrl.u32 %v560, 7
      %v562 = vsub.s32 0, %v561
      %v563 = vrot.slane %v556, %v562
      %v564 = vlaneseq
      %v565 = vshrl.u32 %v564, 7
      %v566 = vsub.s32 0, %v565
      %v567 = vrot.slane %v558, %v566
      %v570 = vcombine.low %v563, %v567
      %v572 = vmul.f32 %v559, %v570
      %v574 = vcombine.high %v572, %v572
      %v576 = vpack.c.bf16 %v572, %v572
      %v577 = vpack.c.bf16 %v574, %v574
      %v580 = vcombine.low %v576, %v577
      %v582 = vunpack.c.l.s4 1983009808
      %v583 = vunpack.c.0.s8 %v582
      %v584 = vlaneseq
      %v585 = vshrl.u32 %v584, 7
      %v586 = vsub.s32 %v583, %v585
      %v587 = vrot.slane %v580, %v586
      %589 = vst [vmem:[%s353] sm:$0xf] %v587
      %s590 = smul.u32 2, %s24
      %p591 = scmp.lt.s32.totalorder %s23, 1
      %s592 = scalar_select %p591, %s23, 1
      %p593 = scmp.lt.s32.totalorder %s590, 1
      %s594 = scalar_select %p593, %s590, 1
      %s595 = smul.addr %s592, 2
      %s596 = sadd.s32 %s594, %s595
      %s597 = smul.addr %s596, 2
      %s598 = scalar_lea.vmem %s7, %s597
      // Predicated region
      $region49: #{attention_block.1} parent=47 // pred_check
        %p599 = pneg %p212
      $region50: #{attention_block.1} parent=47 // pred_check_branch
        %601 = sbr.rel (%p599) target = $region52
      $region51: #{attention_block.1} parent=47 // pred_region
        %s602 = smul.u32 2, %s24
      $region52: #{attention_block.1} parent=47 // pred_fallthru
        _
    $region48: #{attention_block.1} parent=5 // pred_fallthru
      _
    %p603 = scmp.le.s32.totalorder 2, %s14
    // Predicated region
    $region53: #{attention_block.1} parent=5 // pred_check
      %p604 = pneg %p603
    $region54: #{attention_block.1} parent=5 // pred_check_branch
      %606 = sbr.rel (%p604) target = $region56
    $region55: #{attention_block.1} parent=5 // pred_region
      %s607 = ssub.s32 %s14, 2
      // Predicated region
      $region57: #{attention_block.1} parent=55 // pred_check
        %p608 = pneg %p218
      $region58: #{attention_block.1} parent=55 // pred_check_branch
        %610 = sbr.rel (%p608) target = $region60
      $region59: #{attention_block.1} parent=55 // pred_region
        %s611 = smul.u32 2, %s26
        %p612 = scmp.lt.s32.totalorder %s25, 1
        %s613 = scalar_select %p612, %s25, 1
        %p614 = scmp.lt.s32.totalorder %s611, 1
        %s615 = scalar_select %p614, %s611, 1
        %s616 = smul.addr %s613, 2
        %s617 = sadd.s32 %s615, %s616
        %s618 = smul.addr %s617, 2
        %s619 = scalar_lea.vmem %s7, %s618
      $region60: #{attention_block.1} parent=55 // pred_fallthru
        _
    $region56: #{attention_block.1} parent=5 // pred_fallthru
      _
  $region6: #{attention_block.1} parent=0 // loop_footer
    %s18 = sadd.s32 1, %s14
  $region7: #{attention_block.1} parent=0 // loop_footer_branch
    %13 = sbr.rel target = $region3
  $region8: #{attention_block.1} parent=0 // loop_exit
    _

</llo_original>
